<compile_context>
chip_gen: v7x
topology: tpu7x:2x2x1
jax: 0.10.0
libtpu: 0.0.40
codegen_flags: <defaults>
</compile_context>

<pallas_src>
import jax
import jax.numpy as jnp
from jax.experimental import pallas as pl
from jax.experimental.pallas import tpu as pltpu


_VMEM_BUDGET = 40 << 20  # total tile budget; safe on v7x's 64 MiB/TC VMEM


def _target_block_bytes() -> int:
    """Per-logits-block DMA size target, generation-aware (best effort)."""
    try:
        kind = jax.devices()[0].device_kind.lower()
    except Exception:  # e.g. interpret mode / CPU
        return 8 << 20
    if "v7" in kind:
        return 14 << 20          # ~3.2 TB/s HBM -> needs bigger blocks
    if "v5e" in kind or "v5 lite" in kind or "v5litepod" in kind:
        return 4 << 20           # slower HBM; 4 MiB already amortizes overhead
    return 8 << 20               # v6e / default


def _choose_tiles(B: int, S: int, C: int, itemsize: int,
                  s_tile_override: int | None) -> tuple[int, int]:
    """Pick (b_tile, s_tile) jointly against a VMEM budget.

    Constraints:
      * b_tile divides B and is a multiple of 8 (or == B) so the [B, 1]
        target/NLL blocks satisfy the (8, 128) tiling rule.
      * s_tile is a multiple of 8, or == S (single tile).
      * 2 * b_tile*s_tile*C*itemsize (double-buffered logits)
        + b_tile*C*4 (f32 accumulator) fits the budget; shrink b_tile before
        letting s_tile hit the 8-row floor.
      * When B >= 16 keep b_tile <= B//2 so nb >= 2 (both v7x TensorCores
        stream DMAs).
    """
    target_block = _target_block_bytes()
    cands = sorted(
        {d for d in range(1, B + 1) if B % d == 0 and (d % 8 == 0 or d == B)},
        reverse=True)
    if B >= 16:
        pref = [d for d in cands if d <= B // 2 and d % 8 == 0]
        if pref:
            cands = pref
    for bt in cands:
        acc_bytes = bt * C * 4
        row_bytes = bt * C * itemsize
        avail = _VMEM_BUDGET - acc_bytes - (1 << 20)   # 1 MiB slack (outs etc.)
        if avail <= 2 * row_bytes * 8:
            continue                                   # even 8 rows won't fit
        if s_tile_override is not None:
            st = min(s_tile_override, S)
            if st < S:
                st = max(8, (st // 8) * 8)
        else:
            st_budget = avail // (2 * row_bytes)
            st_target = max(8, target_block // row_bytes)
            st = min(st_budget, st_target, S)
            if st < S:
                st = (st // 8) * 8
                if st < 8:
                    continue
        return bt, st
    # Last resort (huge C): smallest legal b_tile, 8-row tiles.
    bt = min(cands)
    return bt, (S if S <= 8 else 8)


def _make_kernel(*, S: int, s_tile: int):
    ragged = (s_tile < S) and (S % s_tile != 0)
    inv_s = 1.0 / float(S)

    def kernel(logits_ref, tgt_ref, nll_ref, acc_ref):
        # logits_ref: [b_tile, s_tile, C] (native dtype, VMEM)
        # tgt_ref   : [b_tile, 1] int32 (VMEM)
        # nll_ref   : [b_tile, 1] f32 output (per-batch NLL)
        # acc_ref   : [b_tile, C] f32 scratch accumulator
        # NOTE: program_id/num_programs are read at the top level only (never
        # inside a pl.when body).
        s = pl.program_id(1)
        ns = pl.num_programs(1)

        @pl.when(s == 0)
        def _init():
            acc_ref[...] = jnp.zeros_like(acc_ref)

        x = logits_ref[...]                                     # [bt, st, C]
        if ragged:
            # Mask rows past the true S on the ragged final tile.  On all
            # other tiles `valid >= s_tile`, so the mask is all-true (cheap
            # VPU ops either way; avoids a jnp.pad full-tensor HBM copy).
            valid = S - s * s_tile
            row = jax.lax.broadcasted_iota(jnp.int32, x.shape, 1)
            x = jnp.where(row < valid, x, jnp.zeros_like(x))
        # Stream the raw-logit sum (inner log_softmax cancels exactly).
        acc_ref[...] += jnp.sum(x, axis=1, dtype=jnp.float32)

        @pl.when(s == ns - 1)
        def _finalize():
            fbar = acc_ref[...] * jnp.float32(inv_s)            # [bt, C]
            # single numerically-stable log_softmax over the class axis
            m = jnp.max(fbar, axis=-1, keepdims=True)
            lse = jnp.log(jnp.sum(jnp.exp(fbar - m), axis=-1, keepdims=True)) + m
            logp = fbar - lse                                   # [bt, C]
            tgt = tgt_ref[...]                                  # [bt, 1] int32
            cls = jax.lax.broadcasted_iota(jnp.int32, logp.shape, 1)
            onehot = (cls == tgt).astype(jnp.float32)           # [bt, C]
            nll_ref[...] = -jnp.sum(logp * onehot, axis=-1, keepdims=True)

    return kernel


def fbar_cross_entropy_loss(logits: jax.Array, targets: jax.Array,
                            *, s_tile: int | None = None) -> jax.Array:
    """logits: [B, S, C] float, targets: [B] int -> scalar f32 loss."""
    B, S, C = logits.shape
    itemsize = jnp.dtype(logits.dtype).itemsize
    b_tile, s_tile = _choose_tiles(B, S, C, itemsize, s_tile)

    nb = B // b_tile
    ns = pl.cdiv(S, s_tile)

    targets_2d = targets.astype(jnp.int32).reshape(B, 1)
    kernel = _make_kernel(S=S, s_tile=s_tile)

    # Explicit VMEM limit covering 2x input buffers + accumulator + slack
    # (default scoped limit is only 16 MiB on v5e / 32 MiB on v6e/v7x).
    block_bytes = b_tile * s_tile * C * itemsize
    vmem_need = 2 * block_bytes + b_tile * C * 4 + 8 * b_tile * 4 + (1 << 20)
    vmem_limit = int(min(max(vmem_need, 16 << 20), 56 << 20))

    nll = pl.pallas_call(
        kernel,
        out_shape=jax.ShapeDtypeStruct((B, 1), jnp.float32),
        grid_spec=pltpu.PrefetchScalarGridSpec(
            num_scalar_prefetch=0,
            grid=(nb, ns),
            in_specs=[
                pl.BlockSpec((b_tile, s_tile, C), lambda b, s: (b, s, 0)),
                pl.BlockSpec((b_tile, 1), lambda b, s: (b, 0)),
            ],
            out_specs=pl.BlockSpec((b_tile, 1), lambda b, s: (b, 0)),
            scratch_shapes=[pltpu.VMEM((b_tile, C), jnp.float32)],
        ),
        compiler_params=pltpu.CompilerParams(
            dimension_semantics=("parallel", "arbitrary"),
            vmem_limit_bytes=vmem_limit),
    )(logits, targets_2d)

    # final mean over batch (tiny [B, 1] reduction) in plain JAX
    return jnp.mean(nll)


def _reference(logits, targets):
    # mirrors the PyTorch module exactly (double log_softmax)
    logp = jax.nn.log_softmax(logits.astype(jnp.float32), axis=-1)
    fbar = jnp.mean(logp, axis=1)
    logp2 = jax.nn.log_softmax(fbar, axis=-1)
    nll = -jnp.take_along_axis(logp2, targets[:, None].astype(jnp.int32), axis=-1)
    return jnp.mean(nll)


if __name__ == "__main__":
    key = jax.random.PRNGKey(0)
    k_logits, k_targets = jax.random.split(key)

    B, S, C = 4, 32, 32  # batch, samples (dim=1), classes (last dim)
    logits = jax.random.normal(k_logits, (B, S, C), dtype=jnp.float32)
    targets = jax.random.randint(k_targets, (B,), 0, C, dtype=jnp.int32)

    # s_tile=8 forces a multi-step S grid so the accumulate/finalize path is
    # exercised even at this small demo shape.
    loss = jax.block_until_ready(fbar_cross_entropy_loss(logits, targets, s_tile=8))
    ref = _reference(logits, targets)
    assert jnp.allclose(loss, ref, atol=1e-5, rtol=1e-5), (loss, ref)

    # Ragged S (28 rows, 8-row tiles) exercises the in-kernel masking path.
    logits_r = logits[:, :28, :]
    loss_r = jax.block_until_ready(fbar_cross_entropy_loss(logits_r, targets, s_tile=8))
    ref_r = _reference(logits_r, targets)
    assert jnp.allclose(loss_r, ref_r, atol=1e-5, rtol=1e-5), (loss_r, ref_r)

    print("KERNEL_OK")
</pallas_src>

<mosaic_0001>
module attributes {stable_mosaic.version = 11 : i64} {
  func.func @kernel(%arg0: i32, %arg1: i32, %arg2: memref<4x8x32xf32, #tpu.memory_space<vmem>>, %arg3: memref<4x1xi32, #tpu.memory_space<vmem>>, %arg4: memref<4x1xf32, #tpu.memory_space<vmem>>, %arg5: memref<4x32xf32, #tpu.memory_space<vmem>>) attributes {dimension_semantics = [#tpu.dimension_semantics<parallel>, #tpu.dimension_semantics<arbitrary>], iteration_bounds = array<i64: 1, 4>, scalar_prefetch = 0 : i64, scratch_operands = 1 : i64, tpu.core_type = #tpu.core_type<tc>, window_params = [{transform_indices = @transform_0, window_bounds = array<i64: 4, 8, 32>}, {transform_indices = @transform_1, window_bounds = array<i64: 4, 1>}, {transform_indices = @transform_2, window_bounds = array<i64: 4, 1>}]} {
    %c0_i32 = arith.constant 0 : i32
    %0 = arith.cmpi eq, %arg1, %c0_i32 : i32
    %1 = arith.extui %0 : i1 to i32
    %c0_i32_0 = arith.constant 0 : i32
    %2 = arith.cmpi ne, %1, %c0_i32_0 : i32
    scf.if %2 {
      %cst_8 = arith.constant 0.000000e+00 : f32
      %11 = vector.broadcast %cst_8 : f32 to vector<4x32xf32>
      %c0_9 = arith.constant 0 : index
      %c0_10 = arith.constant 0 : index
      %12 = vector.load %arg5[%c0_9, %c0_10] : memref<4x32xf32, #tpu.memory_space<vmem>>, vector<4x32xf32>
      tpu.vector_store %arg5[%c0_9, %c0_10], %11 {strides = array<i32>} : memref<4x32xf32, #tpu.memory_space<vmem>>, vector<4x32xf32>,
    } else {
    }
    %c0 = arith.constant 0 : index
    %c0_1 = arith.constant 0 : index
    %c0_2 = arith.constant 0 : index
    %3 = vector.load %arg2[%c0, %c0_1, %c0_2] : memref<4x8x32xf32, #tpu.memory_space<vmem>>, vector<4x8x32xf32>
    %c0_3 = arith.constant 0 : index
    %c0_4 = arith.constant 0 : index
    %4 = vector.load %arg5[%c0_3, %c0_4] : memref<4x32xf32, #tpu.memory_space<vmem>>, vector<4x32xf32>
    %cst = arith.constant dense<0.000000e+00> : vector<4x32xf32>
    %5 = vector.multi_reduction <add>, %3, %cst [1] : vector<4x8x32xf32> to vector<4x32xf32>
    %6 = arith.addf %4, %5 : vector<4x32xf32>
    %c0_5 = arith.constant 0 : index
    %c0_6 = arith.constant 0 : index
    %7 = vector.load %arg5[%c0_5, %c0_6] : memref<4x32xf32, #tpu.memory_space<vmem>>, vector<4x32xf32>
    tpu.vector_store %arg5[%c0_5, %c0_6], %6 {strides = array<i32>} : memref<4x32xf32, #tpu.memory_space<vmem>>, vector<4x32xf32>,
    %c3_i32 = arith.constant 3 : i32
    %8 = arith.cmpi eq, %arg1, %c3_i32 : i32
    %9 = arith.extui %8 : i1 to i32
    %c0_i32_7 = arith.constant 0 : i32
    %10 = arith.cmpi ne, %9, %c0_i32_7 : i32
    scf.if %10 {
      %c0_8 = arith.constant 0 : index
      %c0_9 = arith.constant 0 : index
      %11 = vector.load %arg5[%c0_8, %c0_9] : memref<4x32xf32, #tpu.memory_space<vmem>>, vector<4x32xf32>
      %cst_10 = arith.constant 3.125000e-02 : f32
      %12 = vector.broadcast %cst_10 : f32 to vector<4x32xf32>
      %13 = arith.mulf %11, %12 : vector<4x32xf32>
      %cst_11 = arith.constant dense<0xFF800000> : vector<4xf32>
      %14 = vector.multi_reduction <maximumf>, %13, %cst_11 [1] : vector<4x32xf32> to vector<4xf32>
      %15 = vector.shape_cast %14 : vector<4xf32> to vector<4x1xf32>
      %16 = vector.broadcast %15 : vector<4x1xf32> to vector<4x32xf32>
      %17 = arith.subf %13, %16 : vector<4x32xf32>
      %18 = math.exp %17 : vector<4x32xf32>
      %cst_12 = arith.constant dense<0.000000e+00> : vector<4xf32>
      %19 = vector.multi_reduction <add>, %18, %cst_12 [1] : vector<4x32xf32> to vector<4xf32>
      %20 = vector.shape_cast %19 : vector<4xf32> to vector<4x1xf32>
      %21 = math.log %20 : vector<4x1xf32>
      %22 = arith.addf %21, %15 : vector<4x1xf32>
      %23 = vector.broadcast %22 : vector<4x1xf32> to vector<4x32xf32>
      %24 = arith.subf %13, %23 : vector<4x32xf32>
      %c0_13 = arith.constant 0 : index
      %c0_14 = arith.constant 0 : index
      %25 = vector.load %arg3[%c0_13, %c0_14] : memref<4x1xi32, #tpu.memory_space<vmem>>, vector<4x1xi32>
      %26 = tpu.iota {dimensions = array<i32: 1>} : vector<4x32xi32>
      %27 = vector.broadcast %25 : vector<4x1xi32> to vector<4x32xi32>
      %28 = arith.cmpi eq, %26, %27 : vector<4x32xi32>
      %29 = arith.extui %28 : vector<4x32xi1> to vector<4x32xi32>
      %30 = arith.sitofp %29 : vector<4x32xi32> to vector<4x32xf32>
      %31 = arith.mulf %24, %30 : vector<4x32xf32>
      %cst_15 = arith.constant dense<0.000000e+00> : vector<4xf32>
      %32 = vector.multi_reduction <add>, %31, %cst_15 [1] : vector<4x32xf32> to vector<4xf32>
      %33 = vector.shape_cast %32 : vector<4xf32> to vector<4x1xf32>
      %cst_16 = arith.constant 0.000000e+00 : f32
      %34 = vector.broadcast %cst_16 : f32 to vector<4x1xf32>
      %35 = arith.subf %34, %33 : vector<4x1xf32>
      %c0_17 = arith.constant 0 : index
      %c0_18 = arith.constant 0 : index
      %36 = vector.load %arg4[%c0_17, %c0_18] : memref<4x1xf32, #tpu.memory_space<vmem>>, vector<4x1xf32>
      tpu.vector_store %arg4[%c0_17, %c0_18], %35 {strides = array<i32>} : memref<4x1xf32, #tpu.memory_space<vmem>>, vector<4x1xf32>,
    } else {
    }
    return
  }
  func.func @transform_0(%arg0: i32, %arg1: i32) -> (i32, i32, i32) {
    %c0_i32 = arith.constant 0 : i32
    %c0_i32_0 = arith.constant 0 : i32
    return %arg0, %arg1, %c0_i32 : i32, i32, i32
  }
  func.func @transform_1(%arg0: i32, %arg1: i32) -> (i32, i32) {
    %c0_i32 = arith.constant 0 : i32
    %c0_i32_0 = arith.constant 0 : i32
    return %arg0, %c0_i32 : i32, i32
  }
  func.func @transform_2(%arg0: i32, %arg1: i32) -> (i32, i32) {
    %c0_i32 = arith.constant 0 : i32
    %c0_i32_0 = arith.constant 0 : i32
    return %arg0, %c0_i32 : i32, i32
  }
}

</mosaic_0001>

<llo_original>
// kernel: tpu_custom_call.1
$region0: #{tpu_custom_call.1}
  #allocation0 [shape = 'u32[]', space=smem, size = 0x4, offset = 0x4, fixed_abs, tag = 'smem constant byte address 0x4 - core index']
  #allocation1 [shape = 'u32[144,128]{1,0:T(1,128)}', space=vmem, size = 0x12000, scoped, tag = 'internal scratch']
  #allocation2 [shape = 'f32[4,32]{1,0:T(4,128)}', space=vmem, size = 0x800, scoped, tag = 'scratch operand']
  %s0 = inlined_call_operand.hbm [shape: f32[4,32,32], index: 0, kind: input, shape index: {}]
  %s1 = inlined_call_operand.vmem [shape: s32[4,1], index: 1, kind: input, shape index: {}]
  %s2 = inlined_call_operand.vmem [shape: f32[4,1], index: 2, kind: output, shape index: {}]
  %s3 = sld [smem:[#allocation0]]
  $region53: #{tpu_custom_call.1} parent=0
    _
  %s5 = ssub.s32 1, %s3
  %s6 = scalar_select 0, %s5, %s3
  $region1: #{tpu_custom_call.1} parent=0
    #allocation3 [shape = 'u8[32768]{0}', space=vmem, size = 0x8000, scoped, tag = 'input window, operand 0']
    #allocation4 [shape = 's32[2]{0}', space=sflag, size = 0x8, scoped, tag = 'scoped memory for tpu_custom_call.1']
    %7 = vsyncpa [#allocation4], 0
    %s8 = scalar_lea.sflag [#allocation4], 1
    %9 = vsyncpa %s8, 0
    loop: start=0, step=1, limit=6
    $region2: #{tpu_custom_call.1} parent=1 // loop_pre_header
      _
    $region3: #{tpu_custom_call.1} parent=1 // loop_header
      %s11 = sphi 0, %s15
      %p12 = scmp.ge.s32.totalorder %s11, 6
      %s18 = sphi 0, %s30
      %s19 = sphi 0, %s26
      %s20 = sphi 0, %s18
      %s21 = sphi 0, %s19
      %s22 = sphi 0, %s20
      %s23 = sphi 0, %s21
      %s35 = sphi 0, %s37
      %s38 = sphi 0, %s35
      %s39 = sphi 0, %s38
      %s55 = sphi 0, %s39
      %s61 = sphi 0, %s63
      %s64 = sphi 0, %s61
      %s65 = sphi 0, %s64
      %s81 = sphi 0, %s65
      %s87 = sphi 0, %s89
      %s90 = sphi 0, %s87
      %s91 = sphi 0, %s90
      %s107 = sphi 0, %s91
    $region4: #{tpu_custom_call.1} parent=1 // loop_header_branch
      %14 = sbr.rel (%p12) target = $region8
    $region5: #{tpu_custom_call.1} parent=1 // loop_body
      %s16 = ssub.s32 %s11, 1
      %s17 = ssub.s32 %s11, 2
      %s24 = sadd.s32 1, %s19
      %p25 = scmp.ge.s32.totalorder %s24, 4
      %s26 = scalar_select %p25, 0, %s24
      %s27 = sadd.s32 1, %s18
      %s28 = scalar_select %p25, %s27, %s18
      %p29 = scmp.ge.s32.totalorder %s28, 1
      %s30 = scalar_select %p29, 0, %s28
      %s31 = ssub.s32 %s18, %s30
      %s32 = ssub.s32 %s19, %s26
      %s33 = sor.u32 %s31, %s32
      %p34 = scmp.eq.s32.totalorder %s33, 0
      %s36 = sadd.s32 %s35, 1
      %s37 = scalar_select %p34, %s35, %s36
      %p40 = pneg %p34
      %p41 = scmp.eq.s32.totalorder %s11, 3
      %p42 = por %p40, %p41
      %p43 = scmp.ne.s32.totalorder %s35, %s38
      %p44 = scmp.eq.s32.totalorder %s11, 0
      %p45 = por %p43, %p44
      %p46 = scmp.ne.s32.totalorder %s35, %s38
      %p47 = scmp.eq.s32.totalorder %s16, 3
      %p48 = por %p46, %p47
      %p49 = scmp.ne.s32.totalorder %s38, %s39
      %p50 = scmp.eq.s32.totalorder %s16, 0
      %p51 = por %p49, %p50
      %p52 = scmp.ne.s32.totalorder %s38, %s39
      %p53 = scmp.eq.s32.totalorder %s17, 3
      %p54 = por %p52, %p53
      %p56 = scmp.ne.s32.totalorder %s39, %s55
      %p57 = scmp.eq.s32.totalorder %s17, 0
      %p58 = por %p56, %p57
      %s59 = ssub.s32 %s18, %s30
      %p60 = scmp.eq.s32.totalorder %s59, 0
      %s62 = sadd.s32 %s61, 1
      %s63 = scalar_select %p60, %s61, %s62
      %p66 = pneg %p60
      %p67 = scmp.eq.s32.totalorder %s11, 3
      %p68 = por %p66, %p67
      %p69 = scmp.ne.s32.totalorder %s61, %s64
      %p70 = scmp.eq.s32.totalorder %s11, 0
      %p71 = por %p69, %p70
      %p72 = scmp.ne.s32.totalorder %s61, %s64
      %p73 = scmp.eq.s32.totalorder %s16, 3
      %p74 = por %p72, %p73
      %p75 = scmp.ne.s32.totalorder %s64, %s65
      %p76 = scmp.eq.s32.totalorder %s16, 0
      %p77 = por %p75, %p76
      %p78 = scmp.ne.s32.totalorder %s64, %s65
      %p79 = scmp.eq.s32.totalorder %s17, 3
      %p80 = por %p78, %p79
      %p82 = scmp.ne.s32.totalorder %s65, %s81
      %p83 = scmp.eq.s32.totalorder %s17, 0
      %p84 = por %p82, %p83
      %s85 = ssub.s32 %s18, %s30
      %p86 = scmp.eq.s32.totalorder %s85, 0
      %s88 = sadd.s32 %s87, 1
      %s89 = scalar_select %p86, %s87, %s88
      %p92 = pneg %p86
      %p93 = scmp.eq.s32.totalorder %s11, 3
      %p94 = por %p92, %p93
      %p95 = scmp.ne.s32.totalorder %s87, %s90
      %p96 = scmp.eq.s32.totalorder %s11, 0
      %p97 = por %p95, %p96
      %p98 = scmp.ne.s32.totalorder %s87, %s90
      %p99 = scmp.eq.s32.totalorder %s16, 3
      %p100 = por %p98, %p99
      %p101 = scmp.ne.s32.totalorder %s90, %s91
      %p102 = scmp.eq.s32.totalorder %s16, 0
      %p103 = por %p101, %p102
      %p104 = scmp.ne.s32.totalorder %s90, %s91
      %p105 = scmp.eq.s32.totalorder %s17, 3
      %p106 = por %p104, %p105
      %p108 = scmp.ne.s32.totalorder %s91, %s107
      %p109 = scmp.eq.s32.totalorder %s17, 0
      %p110 = por %p108, %p109
      %p111 = scmp.le.s32.totalorder 1, %s11
      %p112 = scmp.lt.s32.totalorder %s11, 5
      %p113 = pnand %p111, %p112
      %p114 = pneg %p113
      // Predicated region
      $region9: #{tpu_custom_call.1} parent=5 // pred_check
        _
      $region10: #{tpu_custom_call.1} parent=5 // pred_check_branch
        %116 = sbr.rel (%p113) target = $region12
      $region11: #{tpu_custom_call.1} parent=5 // pred_region
        %s117 = ssub.s32 %s11, 1
        // Predicated region
        $region13: #{tpu_custom_call.1} parent=11 // pred_check
          %p118 = pneg %p77
        $region14: #{tpu_custom_call.1} parent=11 // pred_check_branch
          %120 = sbr.rel (%p118) target = $region16
        $region15: #{tpu_custom_call.1} parent=11 // pred_region
          %p121 = scmp.lt.s32.totalorder %s20, 0
          %s122 = scalar_select %p121, %s20, 0
          %s123 = smul.addr %s122, 4
          %s124 = scalar_lea.vmem %s1, %s123
        $region16: #{tpu_custom_call.1} parent=11 // pred_fallthru
          _
      $region12: #{tpu_custom_call.1} parent=5 // pred_fallthru
        _
      %p125 = scmp.lt.s32.totalorder %s11, 4
      // Predicated region
      $region17: #{tpu_custom_call.1} parent=5 // pred_check
        %p126 = pneg %p125
      $region18: #{tpu_custom_call.1} parent=5 // pred_check_branch
        %128 = sbr.rel (%p126) target = $region20
      $region19: #{tpu_custom_call.1} parent=5 // pred_region
        // Predicated region
        $region21: #{tpu_custom_call.1} parent=19 // pred_check
          %p129 = pneg %p45
        $region22: #{tpu_custom_call.1} parent=19 // pred_check_branch
          %131 = sbr.rel (%p129) target = $region24
        $region23: #{tpu_custom_call.1} parent=19 // pred_region
          %s132 = sand.u32 %s35, 1
          %s133 = scalar_lea.sflag [#allocation4], %s132
          %s134 = sand.u32 %s35, 1
          %s135 = smul.addr %s134, 32
          %s136 = scalar_lea.vmem [#allocation3], %s135
          %s137 = smul.u32 4, %s18
          %s139 = ssub.s32 512, 512
          %140 = vsyncadd %s133, %s139
          %s141 = smul.addr %s137, 4
          %s142 = sadd.s32 %s19, %s141
          %s143 = smul.addr %s142, 128
          %s144 = scalar_lea.hbm %s0, %s143
          %s145 = sshll.u32 %s136, 4
          %s146 = int_to_ptr.vmem [resolvable:$true] %s145
          %151 = dma.hbm_to_vmem [thread:$0]  %s144, 512, %s146, %s133, 512, 128, 8
        $region24: #{tpu_custom_call.1} parent=19 // pred_fallthru
          _
      $region20: #{tpu_custom_call.1} parent=5 // pred_fallthru
        _
      %p152 = scmp.le.s32.totalorder 1, %s11
      %p153 = scmp.lt.s32.totalorder %s11, 5
      %p154 = pnand %p152, %p153
      %p155 = pneg %p154
      // Predicated region
      $region25: #{tpu_custom_call.1} parent=5 // pred_check
        _
      $region26: #{tpu_custom_call.1} parent=5 // pred_check_branch
        %157 = sbr.rel (%p154) target = $region28
      $region27: #{tpu_custom_call.1} parent=5 // pred_region
        %s158 = ssub.s32 %s11, 1
        %s159 = sand.u32 %s38, 1
        %s160 = scalar_lea.sflag [#allocation4], %s159
        %s161 = sand.u32 %s38, 1
        %s162 = smul.addr %s161, 32
        %s163 = scalar_lea.vmem [#allocation3], %s162
        // Predicated region
        $region29: #{tpu_custom_call.1} parent=27 // pred_check
          %p164 = pneg %p51
        $region30: #{tpu_custom_call.1} parent=27 // pred_check_branch
          %166 = sbr.rel (%p164) target = $region32
        $region31: #{tpu_custom_call.1} parent=27 // pred_region
          %167 = dma.done %s160, 512
        $region32: #{tpu_custom_call.1} parent=27 // pred_fallthru
          _
        %s168 = sand.u32 %s38, 1
        %s169 = scalar_lea.sflag [#allocation4], %s168
        %s170 = sand.u32 %s38, 1
        %s171 = smul.addr %s170, 32
        %s172 = scalar_lea.vmem [#allocation3], %s171
        %p173 = pneg %p51
        %p174 = pneg %p48
        %p175 = scmp.lt.s32.totalorder %s20, 0
        %s176 = scalar_select %p175, %s20, 0
        %s177 = smul.addr %s176, 4
        %s178 = scalar_lea.vmem %s1, %s177
        %p179 = pneg %p77
        %p180 = pneg %p74
        %p181 = pneg %p103
        %p182 = pneg %p100
        %p183 = scmp.lt.s32.totalorder %s20, 0
        %s184 = scalar_select %p183, %s20, 0
        %s185 = smul.addr %s184, 4
        %s186 = scalar_lea.vmem %s2, %s185
        %s187 = smul.u32 4, %s20
        %p188 = scmp.lt.s32.totalorder %s20, 0
        %s189 = scalar_select %p188, %s20, 0
        %s190 = smul.addr %s189, 4
        %s191 = scalar_lea.vmem %s1, %s190
        %p192 = scmp.lt.s32.totalorder %s20, 0
        %s193 = scalar_select %p192, %s20, 0
        %s194 = smul.addr %s193, 4
        %s195 = scalar_lea.vmem %s2, %s194
        %p196 = scmp.eq.s32.totalorder %s21, 0
        // Predicated region
        $region33: #{tpu_custom_call.1} parent=27 // pred_check
          %p197 = pneg %p196
        $region34: #{tpu_custom_call.1} parent=27 // pred_check_branch
          %199 = sbr.rel (%p197) target = $region36
        $region35: #{tpu_custom_call.1} parent=27 // pred_region
          %vm200 = vcmask 257024
          %201 = vst.msk [vmem:[#allocation2] sm:$0xf] %vm200, 0.0
        $region36: #{tpu_custom_call.1} parent=27 // pred_fallthru
          _
        %v202 = vld [vmem:[%s163] sm:$0xff]
        %v203 = vld [vmem:[%s163 + $0x8] sm:$0xff]
        %v204 = vld [vmem:[%s163 + $0x10] sm:$0xff]
        %v205 = vld [vmem:[%s163 + $0x18] sm:$0xff]
        %v206 = vld [vmem:[#allocation2] sm:$0xf]
        %vm207 = vcmask 261120
        %v208 = vsel %vm207, %v202, 0.0
        %v209 = vrot.slane %v208, 4
        %v210 = vadd.f32 %v208, %v209
        %v211 = vrot.slane %v210, 2
        %v212 = vadd.f32 %v210, %v211
        %v213 = vrot.slane %v212, 1
        %v214 = vadd.f32 %v212, %v213
        %v215 = vsel %vm207, %v203, 0.0
        %v216 = vrot.slane %v215, 4
        %v217 = vadd.f32 %v215, %v216
        %v218 = vrot.slane %v217, 2
        %v219 = vadd.f32 %v217, %v218
        %v220 = vrot.slane %v219, 1
        %v221 = vadd.f32 %v219, %v220
        %v222 = vsel %vm207, %v204, 0.0
        %v223 = vrot.slane %v222, 4
        %v224 = vadd.f32 %v222, %v223
        %v225 = vrot.slane %v224, 2
        %v226 = vadd.f32 %v224, %v225
        %v227 = vrot.slane %v226, 1
        %v228 = vadd.f32 %v226, %v227
        %v229 = vsel %vm207, %v205, 0.0
        %v230 = vrot.slane %v229, 4
        %v231 = vadd.f32 %v229, %v230
        %v232 = vrot.slane %v231, 2
        %v233 = vadd.f32 %v231, %v232
        %v234 = vrot.slane %v233, 1
        %v235 = vadd.f32 %v233, %v234
        %vm240 = vcmask 1041409
        %v241 = vsel %vm240, %v221, %v214
        %vm242 = vcmask 1042434
        %v243 = vsel %vm242, %v228, %v241
        %vm244 = vcmask 1043459
        %v245 = vsel %vm244, %v235, %v243
        %v247 = vadd.f32 %v206, %v245
        %vm248 = vcmask 257024
        %249 = vst.msk [vmem:[#allocation2] sm:$0xf] %vm248, %v247
        %p250 = scmp.eq.s32.totalorder %s21, 3
        // Predicated region
        $region37: #{tpu_custom_call.1} parent=27 // pred_check
          %p251 = pneg %p250
        $region38: #{tpu_custom_call.1} parent=27 // pred_check_branch
          %253 = sbr.rel (%p251) target = $region40
        $region39: #{tpu_custom_call.1} parent=27 // pred_region
          %v254 = vld [vmem:[#allocation2] sm:$0xf]
          %v255 = vmul.f32 %v254, 0.03125
          %v256 = vsel %vm248, %v255, -inf
          %257 = vmax.xlane.f32.xlu0 %v256
          %v258 = vpop.xlane.xlu0 %257
          %v259 = vsub.f32 %v255, %v258
          %v260 = vmul.f32 %v259, 1.442695
          %v261 = vpow.pop %v260
          %v262 = vsel %vm248, %v261, 0.0
          %263 = vadd.xlane.f32.xlu0 %v262
          %v264 = vpop.xlane.xlu0 %263
          %v265 = vlog2.pop %v264
          %v266 = vmul.f32 %v265, 0.6931472
          %v267 = vadd.f32 %v266, %v258
          %v268 = vsub.f32 %v255, %v267
          %v269 = vld [vmem:[%s191] sm:$0xf]
          %v270 = vlaneseq
          %v271 = vand.u32 %v270, 127
          %272 = vset.pattern.permute.xlu0 0
          %273 = vperm.xlu0 %272, %v269
          %v274 = vpop.permute.xlu0 %273
          %vm275 = vcmp.eq.s32.totalorder %v271, %v274
          %v276 = vsel %vm275, 1, 0
          %v277 = vcvt.s32.f32 %v276
          %v278 = vmul.f32 %v268, %v277
          %v279 = vsel %vm248, %v278, 0.0
          %280 = vadd.xlane.f32.xlu0 %v279
          %v281 = vpop.xlane.xlu0 %280
          %v282 = vsub.f32 0.0, %v281
          %vm283 = vcmask 3072
          %284 = vst.msk [vmem:[%s195] sm:$0xf] %vm283, %v282
        $region40: #{tpu_custom_call.1} parent=27 // pred_fallthru
          _
        %p285 = scmp.lt.s32.totalorder %s20, 0
        %s286 = scalar_select %p285, %s20, 0
        %s287 = smul.addr %s286, 4
        %s288 = scalar_lea.vmem %s2, %s287
        // Predicated region
        $region41: #{tpu_custom_call.1} parent=27 // pred_check
          %p289 = pneg %p100
        $region42: #{tpu_custom_call.1} parent=27 // pred_check_branch
          %291 = sbr.rel (%p289) target = $region44
        $region43: #{tpu_custom_call.1} parent=27 // pred_region
          _
        $region44: #{tpu_custom_call.1} parent=27 // pred_fallthru
          _
        // Predicated region
        $region45: #{tpu_custom_call.1} parent=27 // pred_check
          %p292 = pneg %p100
        $region46: #{tpu_custom_call.1} parent=27 // pred_check_branch
          %294 = sbr.rel (%p292) target = $region48
        $region47: #{tpu_custom_call.1} parent=27 // pred_region
          %p295 = scmp.lt.s32.totalorder %s20, 0
          %s296 = scalar_select %p295, %s20, 0
          %s297 = smul.addr %s296, 4
          %s298 = scalar_lea.vmem %s2, %s297
        $region48: #{tpu_custom_call.1} parent=27 // pred_fallthru
          _
      $region28: #{tpu_custom_call.1} parent=5 // pred_fallthru
        _
      %p299 = scmp.le.s32.totalorder 2, %s11
      // Predicated region
      $region49: #{tpu_custom_call.1} parent=5 // pred_check
        %p300 = pneg %p299
      $region50: #{tpu_custom_call.1} parent=5 // pred_check_branch
        %302 = sbr.rel (%p300) target = $region52
      $region51: #{tpu_custom_call.1} parent=5 // pred_region
        %s303 = ssub.s32 %s11, 2
      $region52: #{tpu_custom_call.1} parent=5 // pred_fallthru
        _
    $region6: #{tpu_custom_call.1} parent=1 // loop_footer
      %s15 = sadd.s32 1, %s11
    $region7: #{tpu_custom_call.1} parent=1 // loop_footer_branch
      %10 = sbr.rel target = $region3
    $region8: #{tpu_custom_call.1} parent=1 // loop_exit
      _
    %304 = vsyncpa [#allocation4], 1
    %s305 = scalar_lea.sflag [#allocation4], 1
    %306 = vsyncpa %s305, 1

</llo_original>
